<compile_context>
chip_gen: v6e
topology: v6e:2x2x1
jax: 0.10.0
libtpu: 0.0.40
codegen_flags: <defaults>
</compile_context>

<pallas_src>
import jax
import jax.numpy as jnp
from jax.experimental import pallas as pl
from jax.experimental.pallas import tpu as pltpu


def _content_cnn_kernel(x_ref, w_ref, b_ref, valid_ref, wp_ref, out_ref):
    """x_ref:     (tb, L_pad, K_max*E)  bf16  im2col activation tile
       w_ref:     (K_max*E, n*F)        bf16  fused conv weight
       b_ref:     (1, n*F)              f32   fused conv bias
       valid_ref: (1, n*F)              i32   per-column valid time length
       wp_ref:    (n*F, D_pad)          bf16  projection weight (lane padded)
       out_ref:   (tb, D_pad)           f32
    """
    tb, l, ke = x_ref.shape
    nf = w_ref.shape[1]

    # Fused conv as a single 128-deep MXU matmul.  The leading-dim merge is
    # layout-free because l is a multiple of 8 sublanes and ke is unchanged.
    x = x_ref[...].reshape(tb * l, ke)
    conv = jnp.dot(x, w_ref[...], preferred_element_type=jnp.float32)
    conv = conv.reshape(tb, l, nf)

    # Bias + ReLU (f32 on the VPU).
    h = jnp.maximum(conv + b_ref[...].reshape(1, 1, nf), 0.0)

    # Valid-time mask generated in-kernel: branch column f is valid for
    # t < L - K_f + 1.  Zeroing after ReLU (values >= 0) is exact: masked
    # positions can never win the max-pool (equivalent to a -inf mask).
    t = jax.lax.broadcasted_iota(jnp.int32, (1, l, 1), 1)
    h = jnp.where(t < valid_ref[...].reshape(1, 1, nf), h, 0.0)

    pooled = jnp.max(h, axis=1)                       # (tb, n*F) == torch.cat of pools

    # dropout == identity in eval mode; cat().mm() as one wide matmul.
    logit = jnp.dot(pooled.astype(wp_ref.dtype), wp_ref[...],
                    preferred_element_type=jnp.float32)   # (tb, D_pad)
    out_ref[...] = jnp.tanh(logit)


def _pick_batch_tile(b, l_pad, ke):
    """Size the batch tile from a conservative VMEM budget (v7x-safe), keep it
    a multiple of 8, don't exceed the padded batch, and prefer >= 2 grid steps
    when the batch is large enough (so both v7x TensorCores get work)."""
    budget = 8 << 20                                   # bytes for the x tile
    per_row = l_pad * ke * 2 * 2                       # bf16, double-buffered
    tb = min(256, max(8, budget // per_row))
    tb = min(tb, max(8, -(-b // 8) * 8))               # <= round_up(B, 8)
    tb = max(8, (tb // 8) * 8)
    while tb > 8 and b > 8 and pl.cdiv(b, tb) < 2:
        tb //= 2
    return int(tb)


def content_cnn_forward(node_batch, emb_table, conv_weights, conv_biases,
                        w_proj, kernel_sizes, kernel_num):
    """node_batch: (B, L) int32 token ids; emb_table: (V, E) f32;
    conv_weights[i]: (K_i, E, F); conv_biases[i]: (1, F); w_proj: (n*F, D).
    Returns (B, D) f32."""
    B, L = node_batch.shape
    E = emb_table.shape[1]
    n = len(kernel_sizes)
    nf = n * kernel_num
    k_max = max(kernel_sizes)
    D = w_proj.shape[1]
    assert all(K <= L for K in kernel_sizes), "kernel size exceeds sequence length"

    ke = k_max * E
    l_pad = -(-L // 8) * 8                              # time rounded to sublanes
    d_pad = max(128, -(-D // 128) * 128)                # lane-dense output width

    tb = _pick_batch_tile(B, l_pad, ke)
    b_pad = pl.cdiv(B, tb) * tb
    grid = (b_pad // tb,)

    # Single bf16 activation stream: gather directly from a bf16 table, pad
    # batch / time, then im2col (K_max shifted copies concatenated along E).
    x = jnp.take(emb_table.astype(jnp.bfloat16), node_batch, axis=0)  # (B, L, E)
    x = jnp.pad(x, ((0, b_pad - B), (0, (l_pad - L) + (k_max - 1)), (0, 0)))
    x_col = jnp.concatenate([x[:, k:k + l_pad, :] for k in range(k_max)],
                            axis=-1)                    # (b_pad, l_pad, K_max*E)

    # Fuse conv branches: zero-pad each weight to K_max taps, concat along F,
    # flatten to the im2col contraction layout (k outer, e inner).
    w_fused = jnp.zeros((k_max, E, nf), jnp.float32)
    for i, (K, w) in enumerate(zip(kernel_sizes, conv_weights)):
        w_fused = w_fused.at[:K, :, i * kernel_num:(i + 1) * kernel_num].set(w)
    w_fused = w_fused.reshape(ke, nf).astype(jnp.bfloat16)
    b_fused = jnp.concatenate(conv_biases, axis=1)      # (1, n*F) f32

    # Per-column valid time length (branch i valid for t < L - K_i + 1).
    valid = jnp.concatenate(
        [jnp.full((1, kernel_num), L - K + 1, jnp.int32) for K in kernel_sizes],
        axis=1)                                         # (1, n*F) i32

    # Projection padded to a lane-dense multiple of 128 columns.
    wp = jnp.zeros((nf, d_pad), jnp.float32).at[:, :D].set(w_proj)
    wp = wp.astype(jnp.bfloat16)

    def bcast(shape):
        return pl.BlockSpec(shape, lambda i: (0,) * len(shape))

    out = pl.pallas_call(
        _content_cnn_kernel,
        out_shape=jax.ShapeDtypeStruct((b_pad, d_pad), jnp.float32),
        grid=grid,
        in_specs=[
            pl.BlockSpec((tb, l_pad, ke), lambda i: (i, 0, 0)),  # im2col tile
            bcast((ke, nf)),                                     # fused conv weight
            bcast((1, nf)),                                      # fused conv bias
            bcast((1, nf)),                                      # valid lengths
            bcast((nf, d_pad)),                                  # projection weight
        ],
        out_specs=pl.BlockSpec((tb, d_pad), lambda i: (i, 0)),
        compiler_params=pltpu.CompilerParams(
            dimension_semantics=("parallel",),      # megacore-shardable on v7x
            vmem_limit_bytes=48 * 1024 * 1024,      # under v7x's 64 MiB VMEM
        ),
    )(x_col, w_fused, b_fused, valid, wp)

    return out[:B, :D]


def _xavier_uniform(key, shape, fan_in, fan_out):
    bound = (6.0 / (fan_in + fan_out)) ** 0.5
    return jax.random.uniform(key, shape, jnp.float32, -bound, bound)


def _reference(x_emb, conv_weights, conv_biases, w_proj, kernel_sizes):
    """Plain-JAX f32 replica of ContentCNN.forward (eval mode) for validation."""
    B, L, _ = x_emb.shape
    feats = []
    for K, w, b in zip(kernel_sizes, conv_weights, conv_biases):   # w: (K, E, F)
        T = L - K + 1
        conv = jnp.zeros((B, T, w.shape[-1]), jnp.float32)
        for k in range(K):
            conv = conv + jnp.einsum("bte,ef->btf", x_emb[:, k:k + T, :], w[k])
        conv = jnp.maximum(conv + b, 0.0)
        feats.append(jnp.max(conv, axis=1))
    return jnp.tanh(jnp.concatenate(feats, axis=1) @ w_proj)


if __name__ == "__main__":
    # Small hyper-parameters consistent with ContentCNN.__init__.
    word_num, word_emb_dim = 100, 32
    conv_dim, kernel_num = 16, 8
    kernel_sizes = (2, 3, 4)
    batch, seq_len = 2, 16

    root = jax.random.PRNGKey(0)
    k_emb, k_idx, k_proj, *k_convs = jax.random.split(root, 3 + 2 * len(kernel_sizes))

    # nn.Embedding(word_num, word_emb_dim), xavier_uniform_
    emb_table = _xavier_uniform(k_emb, (word_num, word_emb_dim), word_num, word_emb_dim)

    # nn.Conv2d(1, kernel_num, (K, word_emb_dim)) weights/biases.
    conv_weights, conv_biases = [], []
    for i, K in enumerate(kernel_sizes):
        kw, kb = k_convs[2 * i], k_convs[2 * i + 1]
        fan_in = 1 * K * word_emb_dim
        bound = 1.0 / (fan_in ** 0.5)
        # PyTorch layout (F, 1, K, E) -> kernel layout (K, E, F)
        w_torch = jax.random.uniform(kw, (kernel_num, 1, K, word_emb_dim),
                                     jnp.float32, -bound, bound)
        conv_weights.append(jnp.transpose(w_torch[:, 0], (1, 2, 0)))
        conv_biases.append(jax.random.uniform(kb, (1, kernel_num),
                                              jnp.float32, -bound, bound))

    # self.weight: (len(kernel_sizes)*kernel_num, conv_dim), xavier_uniform_
    w_proj = _xavier_uniform(k_proj, (len(kernel_sizes) * kernel_num, conv_dim),
                             len(kernel_sizes) * kernel_num, conv_dim)

    # node_batch: integer token ids (B, L).
    node_batch = jax.random.randint(k_idx, (batch, seq_len), 0, word_num)

    out = content_cnn_forward(node_batch, emb_table, conv_weights, conv_biases,
                              w_proj, kernel_sizes, kernel_num)
    jax.block_until_ready(out)

    x_emb = jnp.take(emb_table, node_batch, axis=0)            # f32 reference path
    ref = _reference(x_emb, conv_weights, conv_biases, w_proj, kernel_sizes)
    assert out.shape == (batch, conv_dim) and out.dtype == jnp.float32
    assert bool(jnp.allclose(out, ref, rtol=0.0, atol=3e-2)), \
        float(jnp.max(jnp.abs(out - ref)))
    print("KERNEL_OK")
</pallas_src>

<mosaic_0001>
module attributes {stable_mosaic.version = 11 : i64} {
  func.func @_content_cnn_kernel(%arg0: i32, %arg1: memref<8x16x128xbf16, #tpu.memory_space<vmem>>, %arg2: memref<128x24xbf16, #tpu.memory_space<vmem>>, %arg3: memref<1x24xf32, #tpu.memory_space<vmem>>, %arg4: memref<1x24xi32, #tpu.memory_space<vmem>>, %arg5: memref<24x128xbf16, #tpu.memory_space<vmem>>, %arg6: memref<8x128xf32, #tpu.memory_space<vmem>>) attributes {dimension_semantics = [#tpu.dimension_semantics<parallel>], iteration_bounds = array<i64: 1>, scalar_prefetch = 0 : i64, scratch_operands = 0 : i64, tpu.core_type = #tpu.core_type<tc>, window_params = [{transform_indices = @transform_0, window_bounds = array<i64: 8, 16, 128>}, {pipeline_mode = #tpu.pipeline_mode<synchronous>, transform_indices = @transform_1, window_bounds = array<i64: 128, 24>}, {pipeline_mode = #tpu.pipeline_mode<synchronous>, transform_indices = @transform_2, window_bounds = array<i64: 1, 24>}, {pipeline_mode = #tpu.pipeline_mode<synchronous>, transform_indices = @transform_3, window_bounds = array<i64: 1, 24>}, {pipeline_mode = #tpu.pipeline_mode<synchronous>, transform_indices = @transform_4, window_bounds = array<i64: 24, 128>}, {transform_indices = @transform_5, window_bounds = array<i64: 8, 128>}]} {
    %c0 = arith.constant 0 : index
    %c0_0 = arith.constant 0 : index
    %c0_1 = arith.constant 0 : index
    %0 = vector.load %arg1[%c0, %c0_0, %c0_1] : memref<8x16x128xbf16, #tpu.memory_space<vmem>>, vector<8x16x128xbf16>
    %1 = vector.shape_cast %0 : vector<8x16x128xbf16> to vector<128x128xbf16>
    %c0_2 = arith.constant 0 : index
    %c0_3 = arith.constant 0 : index
    %2 = vector.load %arg2[%c0_2, %c0_3] : memref<128x24xbf16, #tpu.memory_space<vmem>>, vector<128x24xbf16>
    %cst = arith.constant dense<0.000000e+00> : vector<128x24xf32>
    %3 = tpu.matmul %1, %2, %cst {dimension_numbers = #tpu.dot_dimension_numbers<[1], [0], [0], [1], [0, 0, 1, 1], [], []>} : vector<128x128xbf16>, vector<128x24xbf16>, vector<128x24xf32> -> vector<128x24xf32>
    %4 = vector.shape_cast %3 : vector<128x24xf32> to vector<8x16x24xf32>
    %c0_4 = arith.constant 0 : index
    %c0_5 = arith.constant 0 : index
    %5 = vector.load %arg3[%c0_4, %c0_5] : memref<1x24xf32, #tpu.memory_space<vmem>>, vector<1x24xf32>
    %6 = vector.shape_cast %5 : vector<1x24xf32> to vector<1x1x24xf32>
    %7 = vector.broadcast %6 : vector<1x1x24xf32> to vector<8x16x24xf32>
    %8 = arith.addf %4, %7 : vector<8x16x24xf32>
    %cst_6 = arith.constant 0.000000e+00 : f32
    %9 = vector.broadcast %cst_6 : f32 to vector<8x16x24xf32>
    %10 = arith.maximumf %8, %9 : vector<8x16x24xf32>
    %11 = tpu.iota {dimensions = array<i32: 1>} : vector<1x16x1xi32>
    %c0_7 = arith.constant 0 : index
    %c0_8 = arith.constant 0 : index
    %12 = vector.load %arg4[%c0_7, %c0_8] : memref<1x24xi32, #tpu.memory_space<vmem>>, vector<1x24xi32>
    %13 = vector.shape_cast %12 : vector<1x24xi32> to vector<1x1x24xi32>
    %14 = vector.broadcast %11 : vector<1x16x1xi32> to vector<1x16x24xi32>
    %15 = vector.broadcast %13 : vector<1x1x24xi32> to vector<1x16x24xi32>
    %16 = arith.cmpi slt, %14, %15 : vector<1x16x24xi32>
    %cst_9 = arith.constant 0.000000e+00 : f32
    %17 = vector.shape_cast %16 : vector<1x16x24xi1> to vector<1x16x24xi1>
    %18 = vector.broadcast %17 : vector<1x16x24xi1> to vector<8x16x24xi1>
    %19 = vector.broadcast %cst_9 : f32 to vector<8x16x24xf32>
    %20 = arith.select %18, %10, %19 : vector<8x16x24xi1>, vector<8x16x24xf32>
    %cst_10 = arith.constant dense<0xFF800000> : vector<8x24xf32>
    %21 = vector.multi_reduction <maximumf>, %20, %cst_10 [1] : vector<8x16x24xf32> to vector<8x24xf32>
    %22 = arith.truncf %21 : vector<8x24xf32> to vector<8x24xbf16>
    %c0_11 = arith.constant 0 : index
    %c0_12 = arith.constant 0 : index
    %23 = vector.load %arg5[%c0_11, %c0_12] : memref<24x128xbf16, #tpu.memory_space<vmem>>, vector<24x128xbf16>
    %cst_13 = arith.constant dense<0.000000e+00> : vector<8x128xf32>
    %24 = tpu.matmul %22, %23, %cst_13 {dimension_numbers = #tpu.dot_dimension_numbers<[1], [0], [0], [1], [0, 0, 1, 1], [], []>} : vector<8x24xbf16>, vector<24x128xbf16>, vector<8x128xf32> -> vector<8x128xf32>
    %25 = math.tanh %24 : vector<8x128xf32>
    %c0_14 = arith.constant 0 : index
    %c0_15 = arith.constant 0 : index
    %26 = vector.load %arg6[%c0_14, %c0_15] : memref<8x128xf32, #tpu.memory_space<vmem>>, vector<8x128xf32>
    tpu.vector_store %arg6[%c0_14, %c0_15], %25 {strides = array<i32>} : memref<8x128xf32, #tpu.memory_space<vmem>>, vector<8x128xf32>,
    return
  }
  func.func @transform_0(%arg0: i32) -> (i32, i32, i32) {
    %c0_i32 = arith.constant 0 : i32
    %c0_i32_0 = arith.constant 0 : i32
    %c0_i32_1 = arith.constant 0 : i32
    return %arg0, %c0_i32, %c0_i32_0 : i32, i32, i32
  }
  func.func @transform_1(%arg0: i32) -> (i32, i32) {
    %c0_i32 = arith.constant 0 : i32
    %c0_i32_0 = arith.constant 0 : i32
    %c0_i32_1 = arith.constant 0 : i32
    return %c0_i32, %c0_i32_0 : i32, i32
  }
  func.func @transform_2(%arg0: i32) -> (i32, i32) {
    %c0_i32 = arith.constant 0 : i32
    %c0_i32_0 = arith.constant 0 : i32
    %c0_i32_1 = arith.constant 0 : i32
    return %c0_i32, %c0_i32_0 : i32, i32
  }
  func.func @transform_3(%arg0: i32) -> (i32, i32) {
    %c0_i32 = arith.constant 0 : i32
    %c0_i32_0 = arith.constant 0 : i32
    %c0_i32_1 = arith.constant 0 : i32
    return %c0_i32, %c0_i32_0 : i32, i32
  }
  func.func @transform_4(%arg0: i32) -> (i32, i32) {
    %c0_i32 = arith.constant 0 : i32
    %c0_i32_0 = arith.constant 0 : i32
    %c0_i32_1 = arith.constant 0 : i32
    return %c0_i32, %c0_i32_0 : i32, i32
  }
  func.func @transform_5(%arg0: i32) -> (i32, i32) {
    %c0_i32 = arith.constant 0 : i32
    %c0_i32_0 = arith.constant 0 : i32
    return %arg0, %c0_i32 : i32, i32
  }
}

</mosaic_0001>

<llo_original>
// kernel: tpu_custom_call.1
$region0: #{tpu_custom_call.1}
  #allocation0 [shape = 'u32[]', space=smem, size = 0x4, offset = 0x4, fixed_abs, tag = 'smem constant byte address 0x4 - core index']
  #allocation1 [shape = 'u32[144,128]{1,0:T(1,128)}', space=vmem, size = 0x12000, scoped, tag = 'internal scratch']
  %s0 = inlined_call_operand.vmem [shape: bf16[8,16,128], index: 0, kind: input, shape index: {}]
  %s1 = inlined_call_operand.vmem [shape: bf16[128,24], index: 1, kind: input, shape index: {}]
  %s2 = inlined_call_operand.vmem [shape: f32[1,24], index: 2, kind: input, shape index: {}]
  %s3 = inlined_call_operand.vmem [shape: s32[1,24], index: 3, kind: input, shape index: {}]
  %s4 = inlined_call_operand.vmem [shape: bf16[24,128], index: 4, kind: input, shape index: {}]
  %s5 = inlined_call_operand.hbm [shape: f32[8,128], index: 5, kind: output, shape index: {}]
  %s6 = sld [smem:[#allocation0]]
  $region30: #{tpu_custom_call.1} parent=0
    _
  %s8 = ssub.s32 1, %s6
  %s9 = scalar_select 0, %s8, %s6
  $region1: #{tpu_custom_call.1} parent=0
    #allocation2 [shape = 'u8[4096]{0}', space=vmem, size = 0x1000, scoped, tag = 'output window, operand 0, single buffered']
    #allocation3 [shape = 's32[1]{0}', space=sflag, size = 0x4, scoped, tag = 'scoped memory for tpu_custom_call.1']
    %10 = vsyncpa [#allocation3], 0
    // Predicated region
    $region2: #{tpu_custom_call.1} parent=1 // pred_check
      _
    $region3: #{tpu_custom_call.1} parent=1 // pred_check_branch
      %12 = sbr.rel (0) target = $region5
    $region4: #{tpu_custom_call.1} parent=1 // pred_region
      _
    $region5: #{tpu_custom_call.1} parent=1 // pred_fallthru
      _
    // Predicated region
    $region6: #{tpu_custom_call.1} parent=1 // pred_check
      _
    $region7: #{tpu_custom_call.1} parent=1 // pred_check_branch
      %14 = sbr.rel (0) target = $region9
    $region8: #{tpu_custom_call.1} parent=1 // pred_region
      _
    $region9: #{tpu_custom_call.1} parent=1 // pred_fallthru
      _
    // Predicated region
    $region10: #{tpu_custom_call.1} parent=1 // pred_check
      _
    $region11: #{tpu_custom_call.1} parent=1 // pred_check_branch
      %16 = sbr.rel (0) target = $region13
    $region12: #{tpu_custom_call.1} parent=1 // pred_region
      _
    $region13: #{tpu_custom_call.1} parent=1 // pred_fallthru
      _
    // Predicated region
    $region14: #{tpu_custom_call.1} parent=1 // pred_check
      _
    $region15: #{tpu_custom_call.1} parent=1 // pred_check_branch
      %18 = sbr.rel (0) target = $region17
    $region16: #{tpu_custom_call.1} parent=1 // pred_region
      _
    $region17: #{tpu_custom_call.1} parent=1 // pred_fallthru
      _
    // Predicated region
    $region18: #{tpu_custom_call.1} parent=1 // pred_check
      _
    $region19: #{tpu_custom_call.1} parent=1 // pred_check_branch
      %20 = sbr.rel (0) target = $region21
    $region20: #{tpu_custom_call.1} parent=1 // pred_region
      _
    $region21: #{tpu_custom_call.1} parent=1 // pred_fallthru
      _
    %v22 = vld [vmem:[%s0] sm:$0xf]
    %v23 = vld [vmem:[%s0 + $0x4] sm:$0xf]
    %v24 = vld [vmem:[%s0 + $0x8] sm:$0xf]
    %v25 = vld [vmem:[%s0 + $0xc] sm:$0xf]
    %v26 = vld [vmem:[%s0 + $0x10] sm:$0xf]
    %v27 = vld [vmem:[%s0 + $0x14] sm:$0xf]
    %v28 = vld [vmem:[%s0 + $0x18] sm:$0xf]
    %v29 = vld [vmem:[%s0 + $0x1c] sm:$0xf]
    %v30 = vld [vmem:[%s0 + $0x20] sm:$0xf]
    %v31 = vld [vmem:[%s0 + $0x24] sm:$0xf]
    %v32 = vld [vmem:[%s0 + $0x28] sm:$0xf]
    %v33 = vld [vmem:[%s0 + $0x2c] sm:$0xf]
    %v34 = vld [vmem:[%s0 + $0x30] sm:$0xf]
    %v35 = vld [vmem:[%s0 + $0x34] sm:$0xf]
    %v36 = vld [vmem:[%s0 + $0x38] sm:$0xf]
    %v37 = vld [vmem:[%s0 + $0x3c] sm:$0xf]
    %v38 = vld [vmem:[%s1] sm:$0xf]
    %v39 = vld [vmem:[%s1 + $0x4] sm:$0xf]
    %v40 = vld [vmem:[%s1 + $0x8] sm:$0xf]
    %v41 = vld [vmem:[%s1 + $0xc] sm:$0xf]
    %v42 = vld [vmem:[%s1 + $0x10] sm:$0xf]
    %v43 = vld [vmem:[%s1 + $0x14] sm:$0xf]
    %v44 = vld [vmem:[%s1 + $0x18] sm:$0xf]
    %v45 = vld [vmem:[%s1 + $0x1c] sm:$0xf]
    %v46 = vld [vmem:[%s1 + $0x20] sm:$0xf]
    %v47 = vld [vmem:[%s1 + $0x24] sm:$0xf]
    %v48 = vld [vmem:[%s1 + $0x28] sm:$0xf]
    %v49 = vld [vmem:[%s1 + $0x2c] sm:$0xf]
    %v50 = vld [vmem:[%s1 + $0x30] sm:$0xf]
    %v51 = vld [vmem:[%s1 + $0x34] sm:$0xf]
    %v52 = vld [vmem:[%s1 + $0x38] sm:$0xf]
    %v53 = vld [vmem:[%s1 + $0x3c] sm:$0xf]
    %v70 = vunpack.c.l.b16 %v22
    %v71 = vunpack.c.l.b16 %v23
    %v72 = vunpack.c.l.b16 %v24
    %v73 = vunpack.c.l.b16 %v25
    %v74 = vunpack.c.l.b16 %v26
    %v75 = vunpack.c.l.b16 %v27
    %v76 = vunpack.c.l.b16 %v28
    %v77 = vunpack.c.l.b16 %v29
    %v78 = vunpack.c.l.b16 %v30
    %v79 = vunpack.c.l.b16 %v31
    %v80 = vunpack.c.l.b16 %v32
    %v81 = vunpack.c.l.b16 %v33
    %v82 = vunpack.c.l.b16 %v34
    %v83 = vunpack.c.l.b16 %v35
    %v84 = vunpack.c.l.b16 %v36
    %v85 = vunpack.c.l.b16 %v37
    %v86 = vpack.c.b16 %v71, %v70
    %v87 = vpack.c.b16 %v73, %v72
    %v88 = vpack.c.b16 %v75, %v74
    %v89 = vpack.c.b16 %v77, %v76
    %v90 = vpack.c.b16 %v79, %v78
    %v91 = vpack.c.b16 %v81, %v80
    %v92 = vpack.c.b16 %v83, %v82
    %v93 = vpack.c.b16 %v85, %v84
    %v118 = vunpack.c.l.b16 %v38
    %v119 = vunpack.c.l.b16 %v39
    %v120 = vunpack.c.l.b16 %v40
    %v121 = vunpack.c.l.b16 %v41
    %v122 = vunpack.c.l.b16 %v42
    %v123 = vunpack.c.l.b16 %v43
    %v124 = vunpack.c.l.b16 %v44
    %v125 = vunpack.c.l.b16 %v45
    %v126 = vunpack.c.l.b16 %v46
    %v127 = vunpack.c.l.b16 %v47
    %v128 = vunpack.c.l.b16 %v48
    %v129 = vunpack.c.l.b16 %v49
    %v130 = vunpack.c.l.b16 %v50
    %v131 = vunpack.c.l.b16 %v51
    %v132 = vunpack.c.l.b16 %v52
    %v133 = vunpack.c.l.b16 %v53
    %v134 = vpack.c.b16 %v119, %v118
    %v135 = vpack.c.b16 %v121, %v120
    %v136 = vpack.c.b16 %v123, %v122
    %v137 = vpack.c.b16 %v125, %v124
    %v138 = vpack.c.b16 %v127, %v126
    %v139 = vpack.c.b16 %v129, %v128
    %v140 = vpack.c.b16 %v131, %v130
    %v141 = vpack.c.b16 %v133, %v132
    %150 = vmatprep.subr.bf16.mxu0 0
    %151 = vmatpush1.bf16.msra.mxu0 %v141
    %152 = vmatprep.subr.bf16.mxu0 0
    %153 = vmatpush1.bf16.msra.mxu0 %v140
    %154 = vmatprep.subr.bf16.mxu0 0
    %155 = vmatpush1.bf16.msra.mxu0 %v139
    %156 = vmatprep.subr.bf16.mxu0 0
    %157 = vmatpush1.bf16.msra.mxu0 %v138
    %158 = vmatprep.subr.bf16.mxu0 0
    %159 = vmatpush1.bf16.msra.mxu0 %v137
    %160 = vmatprep.subr.bf16.mxu0 0
    %161 = vmatpush1.bf16.msra.mxu0 %v136
    %162 = vmatprep.subr.bf16.mxu0 0
    %163 = vmatpush1.bf16.msra.mxu0 %v135
    %164 = vmatprep.subr.bf16.mxu0 0
    %165 = vmatpush1.bf16.msra.mxu0 %v134
    %166 = vmatprep.subr.bf16.mxu0 0
    %167 = vmatpush2.bf16.msra.mxu0 0
    %168 = vmatprep.subr.bf16.mxu0 0
    %169 = vmatpush2.bf16.msra.mxu0 0
    %170 = vmatprep.subr.bf16.mxu0 0
    %171 = vmatpush2.bf16.msra.mxu0 0
    %172 = vmatprep.subr.bf16.mxu0 0
    %173 = vmatpush2.bf16.msra.mxu0 0
    %174 = vmatprep.subr.bf16.mxu0 0
    %175 = vmatpush2.bf16.msra.mxu0 0
    %176 = vmatprep.subr.bf16.mxu0 0
    %177 = vmatpush2.bf16.msra.mxu0 0
    %178 = vmatprep.subr.bf16.mxu0 0
    %179 = vmatpush2.bf16.msra.mxu0 0
    %180 = vmatprep.subr.bf16.mxu0 0
    %181 = vmatpush2.bf16.msra.mxu0 0
    %182 = vmatprep.mubr.bf16.mxu0 0
    %183 = vmatmul.mubr.bf16.gmra.mxu0 %v86
    %v184 = vpop.f32.mrf.mxu0
    %v185 = vadd.f32 0.0, %v184
    %v186 = vpop.f32.mrf.mxu0
    %v187 = vpop.f32.mrf.mxu0
    %v188 = vadd.f32 0.0, %v187
    %v189 = vpop.f32.mrf.mxu0
    %190 = vmatprep.mubr.bf16.mxu0 0
    %191 = vmatmul.mubr.bf16.gmra.mxu0 %v87
    %v192 = vpop.f32.mrf.mxu0
    %v193 = vadd.f32 0.0, %v192
    %v194 = vpop.f32.mrf.mxu0
    %v195 = vpop.f32.mrf.mxu0
    %v196 = vadd.f32 0.0, %v195
    %v197 = vpop.f32.mrf.mxu0
    %198 = vmatprep.mubr.bf16.mxu0 0
    %199 = vmatmul.mubr.bf16.gmra.mxu0 %v88
    %v200 = vpop.f32.mrf.mxu0
    %v201 = vadd.f32 0.0, %v200
    %v202 = vpop.f32.mrf.mxu0
    %v203 = vpop.f32.mrf.mxu0
    %v204 = vadd.f32 0.0, %v203
    %v205 = vpop.f32.mrf.mxu0
    %206 = vmatprep.mubr.bf16.mxu0 0
    %207 = vmatmul.mubr.bf16.gmra.mxu0 %v89
    %v208 = vpop.f32.mrf.mxu0
    %v209 = vadd.f32 0.0, %v208
    %v210 = vpop.f32.mrf.mxu0
    %v211 = vpop.f32.mrf.mxu0
    %v212 = vadd.f32 0.0, %v211
    %v213 = vpop.f32.mrf.mxu0
    %214 = vmatprep.mubr.bf16.mxu0 0
    %215 = vmatmul.mubr.bf16.gmra.mxu0 %v90
    %v216 = vpop.f32.mrf.mxu0
    %v217 = vadd.f32 0.0, %v216
    %v218 = vpop.f32.mrf.mxu0
    %v219 = vpop.f32.mrf.mxu0
    %v220 = vadd.f32 0.0, %v219
    %v221 = vpop.f32.mrf.mxu0
    %222 = vmatprep.mubr.bf16.mxu0 0
    %223 = vmatmul.mubr.bf16.gmra.mxu0 %v91
    %v224 = vpop.f32.mrf.mxu0
    %v225 = vadd.f32 0.0, %v224
    %v226 = vpop.f32.mrf.mxu0
    %v227 = vpop.f32.mrf.mxu0
    %v228 = vadd.f32 0.0, %v227
    %v229 = vpop.f32.mrf.mxu0
    %230 = vmatprep.mubr.bf16.mxu0 0
    %231 = vmatmul.mubr.bf16.gmra.mxu0 %v92
    %v232 = vpop.f32.mrf.mxu0
    %v233 = vadd.f32 0.0, %v232
    %v234 = vpop.f32.mrf.mxu0
    %v235 = vpop.f32.mrf.mxu0
    %v236 = vadd.f32 0.0, %v235
    %v237 = vpop.f32.mrf.mxu0
    %238 = vmatprep.mubr.bf16.mxu0 0
    %239 = vmatmul.mubr.bf16.gmra.mxu0 %v93
    %v240 = vpop.f32.mrf.mxu0
    %v241 = vadd.f32 0.0, %v240
    %v242 = vpop.f32.mrf.mxu0
    %v243 = vpop.f32.mrf.mxu0
    %v244 = vadd.f32 0.0, %v243
    %v245 = vpop.f32.mrf.mxu0
    %246 = vdwg.mxu0
    %v247 = vld [vmem:[%s2] sm:$0x1]
    %v249 = vlaneseq
    %v250 = vshrl.u32 %v249, 7
    %v251 = vsub.s32 0, %v250
    %v252 = vrot.slane %v247, %v251
    %v254 = vadd.f32 %v185, %v252
    %v255 = vadd.f32 %v188, %v252
    %v256 = vadd.f32 %v193, %v252
    %v257 = vadd.f32 %v196, %v252
    %v258 = vadd.f32 %v201, %v252
    %v259 = vadd.f32 %v204, %v252
    %v260 = vadd.f32 %v209, %v252
    %v261 = vadd.f32 %v212, %v252
    %v262 = vadd.f32 %v217, %v252
    %v263 = vadd.f32 %v220, %v252
    %v264 = vadd.f32 %v225, %v252
    %v265 = vadd.f32 %v228, %v252
    %v266 = vadd.f32 %v233, %v252
    %v267 = vadd.f32 %v236, %v252
    %v268 = vadd.f32 %v241, %v252
    %v269 = vadd.f32 %v244, %v252
    %v270 = vmax.f32 %v254, 0.0
    %v271 = vmax.f32 %v255, 0.0
    %v272 = vmax.f32 %v256, 0.0
    %v273 = vmax.f32 %v257, 0.0
    %v274 = vmax.f32 %v258, 0.0
    %v275 = vmax.f32 %v259, 0.0
    %v276 = vmax.f32 %v260, 0.0
    %v277 = vmax.f32 %v261, 0.0
    %v278 = vmax.f32 %v262, 0.0
    %v279 = vmax.f32 %v263, 0.0
    %v280 = vmax.f32 %v264, 0.0
    %v281 = vmax.f32 %v265, 0.0
    %v282 = vmax.f32 %v266, 0.0
    %v283 = vmax.f32 %v267, 0.0
    %v284 = vmax.f32 %v268, 0.0
    %v285 = vmax.f32 %v269, 0.0
    %v286 = vlaneseq
    %v287 = vshrl.u32 %v286, 7
    %v288 = vadd.s32 %v287, 8
    %v289 = vld [vmem:[%s3] sm:$0x1]
    %v290 = vlaneseq
    %v291 = vshrl.u32 %v290, 7
    %v292 = vsub.s32 0, %v291
    %v293 = vrot.slane %v289, %v292
    %vm294 = vcmp.lt.s32.totalorder %v287, %v293
    %vm295 = vcmp.lt.s32.totalorder %v288, %v293
    %v296 = vsel %vm294, 1, 0
    %v297 = vsel %vm295, 1, 0
    %vm298 = vcmp.eq.s32.totalorder %v296, 1
    %vm299 = vcmp.eq.s32.totalorder %v297, 1
    %v300 = vsel %vm298, %v270, 0.0
    %v301 = vsel %vm299, %v271, 0.0
    %v302 = vsel %vm298, %v272, 0.0
    %v303 = vsel %vm299, %v273, 0.0
    %v304 = vsel %vm298, %v274, 0.0
    %v305 = vsel %vm299, %v275, 0.0
    %v306 = vsel %vm298, %v276, 0.0
    %v307 = vsel %vm299, %v277, 0.0
    %v308 = vsel %vm298, %v278, 0.0
    %v309 = vsel %vm299, %v279, 0.0
    %v310 = vsel %vm298, %v280, 0.0
    %v311 = vsel %vm299, %v281, 0.0
    %v312 = vsel %vm298, %v282, 0.0
    %v313 = vsel %vm299, %v283, 0.0
    %v314 = vsel %vm298, %v284, 0.0
    %v315 = vsel %vm299, %v285, 0.0
    %vm316 = vcmask 195584
    %v317 = vsel %vm316, %v300, -inf
    %v318 = vsel %vm316, %v301, -inf
    %v319 = vmax.f32 %v317, %v318
    %v320 = vrot.slane %v319, 4
    %v321 = vmax.f32 %v319, %v320
    %v322 = vrot.slane %v321, 2
    %v323 = vmax.f32 %v321, %v322
    %v324 = vrot.slane %v323, 1
    %v325 = vmax.f32 %v323, %v324
    %v326 = vsel %vm316, %v302, -inf
    %v327 = vsel %vm316, %v303, -inf
    %v328 = vmax.f32 %v326, %v327
    %v329 = vrot.slane %v328, 4
    %v330 = vmax.f32 %v328, %v329
    %v331 = vrot.slane %v330, 2
    %v332 = vmax.f32 %v330, %v331
    %v333 = vrot.slane %v332, 1
    %v334 = vmax.f32 %v332, %v333
    %v335 = vsel %vm316, %v304, -inf
    %v336 = vsel %vm316, %v305, -inf
    %v337 = vmax.f32 %v335, %v336
    %v338 = vrot.slane %v337, 4
    %v339 = vmax.f32 %v337, %v338
    %v340 = vrot.slane %v339, 2
    %v341 = vmax.f32 %v339, %v340
    %v342 = vrot.slane %v341, 1
    %v343 = vmax.f32 %v341, %v342
    %v344 = vsel %vm316, %v306, -inf
    %v345 = vsel %vm316, %v307, -inf
    %v346 = vmax.f32 %v344, %v345
    %v347 = vrot.slane %v346, 4
    %v348 = vmax.f32 %v346, %v347
    %v349 = vrot.slane %v348, 2
    %v350 = vmax.f32 %v348, %v349
    %v351 = vrot.slane %v350, 1
    %v352 = vmax.f32 %v350, %v351
    %v353 = vsel %vm316, %v308, -inf
    %v354 = vsel %vm316, %v309, -inf
    %v355 = vmax.f32 %v353, %v354
    %v356 = vrot.slane %v355, 4
    %v357 = vmax.f32 %v355, %v356
    %v358 = vrot.slane %v357, 2
    %v359 = vmax.f32 %v357, %v358
    %v360 = vrot.slane %v359, 1
    %v361 = vmax.f32 %v359, %v360
    %v362 = vsel %vm316, %v310, -inf
    %v363 = vsel %vm316, %v311, -inf
    %v364 = vmax.f32 %v362, %v363
    %v365 = vrot.slane %v364, 4
    %v366 = vmax.f32 %v364, %v365
    %v367 = vrot.slane %v366, 2
    %v368 = vmax.f32 %v366, %v367
    %v369 = vrot.slane %v368, 1
    %v370 = vmax.f32 %v368, %v369
    %v371 = vsel %vm316, %v312, -inf
    %v372 = vsel %vm316, %v313, -inf
    %v373 = vmax.f32 %v371, %v372
    %v374 = vrot.slane %v373, 4
    %v375 = vmax.f32 %v373, %v374
    %v376 = vrot.slane %v375, 2
    %v377 = vmax.f32 %v375, %v376
    %v378 = vrot.slane %v377, 1
    %v379 = vmax.f32 %v377, %v378
    %v380 = vsel %vm316, %v314, -inf
    %v381 = vsel %vm316, %v315, -inf
    %v382 = vmax.f32 %v380, %v381
    %v383 = vrot.slane %v382, 4
    %v384 = vmax.f32 %v382, %v383
    %v385 = vrot.slane %v384, 2
    %v386 = vmax.f32 %v384, %v385
    %v387 = vrot.slane %v386, 1
    %v388 = vmax.f32 %v386, %v387
    %v389 = vpack.c.bf16 %v325, %v325
    %v390 = vpack.c.bf16 %v334, %v334
    %v391 = vpack.c.bf16 %v343, %v343
    %v392 = vpack.c.bf16 %v352, %v352
    %v393 = vpack.c.bf16 %v361, %v361
    %v394 = vpack.c.bf16 %v370, %v370
    %v395 = vpack.c.bf16 %v379, %v379
    %v396 = vpack.c.bf16 %v388, %v388
    %v397 = vld [vmem:[%s4] sm:$0xf]
    %v398 = vld [vmem:[%s4 + $0x4] sm:$0xf]
    %v399 = vld [vmem:[%s4 + $0x8] sm:$0xf]
    %v408 = vunpack.c.l.b16 %v389
    %v409 = vunpack.c.l.b16 %v390
    %v410 = vunpack.c.l.b16 %v391
    %v411 = vunpack.c.l.b16 %v392
    %v412 = vunpack.c.l.b16 %v393
    %v413 = vunpack.c.l.b16 %v394
    %v414 = vunpack.c.l.b16 %v395
    %v415 = vunpack.c.l.b16 %v396
    %vm416 = vcmask 1041409
    %v417 = vsel %vm416, %v409, %v408
    %vm418 = vcmask 1042434
    %v419 = vsel %vm418, %v410, %v417
    %vm420 = vcmask 1043459
    %v421 = vsel %vm420, %v411, %v419
    %vm422 = vcmask 1044484
    %v423 = vsel %vm422, %v412, %v421
    %vm424 = vcmask 1045509
    %v425 = vsel %vm424, %v413, %v423
    %vm426 = vcmask 1046534
    %v427 = vsel %vm426, %v414, %v425
    %vm428 = vcmask 1047559
    %v429 = vsel %vm428, %v415, %v427
    %v430 = vpack.c.b16 %v429, %v429
    %v434 = vunpack.c.l.b16 %v397
    %v435 = vunpack.c.l.b16 %v398
    %v436 = vunpack.c.l.b16 %v399
    %v437 = vpack.c.b16 %v435, %v434
    %v438 = vpack.c.b16 %v436, %v436
    %v441 = vsel %vm316, %v430, 0
    %vm443 = vcmask 1043456
    %v445 = vsel %vm443, %v438, 0
    %447 = vmatprep.subr.bf16.mxu0 0
    %448 = vmatpush1.bf16.msra.mxu0 0
    %449 = vmatprep.subr.bf16.mxu0 0
    %450 = vmatpush1.bf16.msra.mxu0 0
    %451 = vmatprep.subr.bf16.mxu0 0
    %452 = vmatpush1.bf16.msra.mxu0 0
    %453 = vmatprep.subr.bf16.mxu0 0
    %454 = vmatpush1.bf16.msra.mxu0 0
    %455 = vmatprep.subr.bf16.mxu0 0
    %456 = vmatpush1.bf16.msra.mxu0 0
    %457 = vmatprep.subr.bf16.mxu0 0
    %458 = vmatpush1.bf16.msra.mxu0 0
    %459 = vmatprep.subr.bf16.mxu0 0
    %460 = vmatpush1.bf16.msra.mxu0 %v445
    %461 = vmatprep.subr.bf16.mxu0 0
    %462 = vmatpush1.bf16.msra.mxu0 %v437
    %463 = vmatprep.subr.bf16.mxu0 0
    %464 = vmatpush2.bf16.msra.mxu0 0
    %465 = vmatprep.subr.bf16.mxu0 0
    %466 = vmatpush2.bf16.msra.mxu0 0
    %467 = vmatprep.subr.bf16.mxu0 0
    %468 = vmatpush2.bf16.msra.mxu0 0
    %469 = vmatprep.subr.bf16.mxu0 0
    %470 = vmatpush2.bf16.msra.mxu0 0
    %471 = vmatprep.subr.bf16.mxu0 0
    %472 = vmatpush2.bf16.msra.mxu0 0
    %473 = vmatprep.subr.bf16.mxu0 0
    %474 = vmatpush2.bf16.msra.mxu0 0
    %475 = vmatprep.subr.bf16.mxu0 0
    %476 = vmatpush2.bf16.msra.mxu0 0
    %477 = vmatprep.subr.bf16.mxu0 0
    %478 = vmatpush2.bf16.msra.mxu0 0
    %479 = vmatprep.mubr.bf16.mxu0 0
    %480 = vmatmul.mubr.bf16.gmra.mxu0 %v441
    %v481 = vpop.f32.mrf.mxu0
    %v482 = vadd.f32 0.0, %v481
    %v483 = vpop.f32.mrf.mxu0
    %v484 = vpop.f32.mrf.mxu0
    %v485 = vpop.f32.mrf.mxu0
    %486 = vdwg.mxu0
    %v487 = vtanh.pop %v482
    %488 = vst [vmem:[#allocation2] sm:$0xff] %v487
    // Predicated region
    $region22: #{tpu_custom_call.1} parent=1 // pred_check
      _
    $region23: #{tpu_custom_call.1} parent=1 // pred_check_branch
      %490 = sbr.rel (0) target = $region25
    $region24: #{tpu_custom_call.1} parent=1 // pred_region
      %s492 = ssub.s32 128, 128
      %493 = vsyncadd [#allocation3], %s492
      %s495 = sshll.u32 [#allocation2], 4
      %s496 = int_to_ptr.vmem [resolvable:$true] %s495
      %498 = dma.vmem_to_hbm [thread:$0]  %s496, 128, %s5, [#allocation3]
    $region25: #{tpu_custom_call.1} parent=1 // pred_fallthru
      _
    // Predicated region
    $region26: #{tpu_custom_call.1} parent=1 // pred_check
      _
    $region27: #{tpu_custom_call.1} parent=1 // pred_check_branch
      %500 = sbr.rel (0) target = $region29
    $region28: #{tpu_custom_call.1} parent=1 // pred_region
      %501 = dma.done [#allocation3], 128
    $region29: #{tpu_custom_call.1} parent=1 // pred_fallthru
      _
    %502 = vsyncpa [#allocation3], 1

</llo_original>
